<compile_context>
chip_gen: v6e
topology: v6e:2x2x1
jax: 0.10.0
libtpu: 0.0.40
codegen_flags: <defaults>
</compile_context>

<pallas_src>
import functools
import math

import jax
import jax.numpy as jnp
from jax.experimental import pallas as pl
from jax.experimental.pallas import tpu as pltpu


_LANE_CANDIDATES = (4096, 2048, 1024, 512, 256, 128)
_TARGET_TILE_BYTES = 4 * 1024 * 1024   # ~4 MiB / block -> ~16 MiB VMEM double-buffered
_VMEM_LIMIT_BYTES = 48 * 1024 * 1024   # fits v7x's 64 MiB/TC; ample on v5e/v6e
_MIN_PALLAS_ELEMS = 1024               # below this a standalone launch is pure overhead


def _relu_kernel(x_ref, o_ref):
    # Elementwise ReLU on the current VMEM tile (pure VPU op, no XLU/EUP/MXU).
    o_ref[...] = jnp.maximum(x_ref[...], jnp.zeros((), x_ref.dtype))


def _sublane_tile(dtype) -> int:
    itemsize = jnp.dtype(dtype).itemsize
    if itemsize >= 4:
        return 8
    if itemsize == 2:
        return 16
    return 32


def _choose_lane_width(n: int, sub: int):
    """Widest lane width (multiple of 128) dividing n, preferring row counts
    that are whole sublane tiles and big enough for >=2 grid steps."""
    best = None  # (score, lane)
    for lane in _LANE_CANDIDATES:
        if n % lane:
            continue
        rows = n // lane
        if rows % sub == 0 and rows >= 2 * sub:
            score = 3
        elif rows % sub == 0:
            score = 2
        else:
            score = 1
        if best is None or score > best[0]:
            best = (score, lane)
        if score == 3:
            break  # candidates are widest-first; first score-3 hit is best
    return None if best is None else best[1]


def _choose_row_tile(rows: int, lane: int, itemsize: int, sub: int) -> int:
    if rows <= sub:
        return rows  # block dim == full array dim is always legal
    target = max(sub, (_TARGET_TILE_BYTES // (lane * itemsize)) // sub * sub)
    row_tile = min(target, (rows // sub) * sub)
    # v7x has 2 TensorCores: give the parallel axis >=2 steps when possible.
    if pl.cdiv(rows, row_tile) < 2 and rows >= 2 * sub:
        row_tile = max(sub, ((rows // 2) // sub) * sub)
    return row_tile


@functools.partial(jax.jit, static_argnames=("donate",))
def relu_pallas(x: jax.Array, donate: bool = False) -> jax.Array:
    """Elementwise ReLU via a lane-dense Pallas TPU kernel (any shape/dtype)."""
    orig_shape = x.shape
    n = math.prod(orig_shape) if orig_shape else 1
    itemsize = jnp.dtype(x.dtype).itemsize
    sub = _sublane_tile(x.dtype)

    lane = _choose_lane_width(n, sub) if n >= _MIN_PALLAS_ELEMS else None
    if lane is None:
        # Tiny tensors or element counts not divisible by 128: a standalone
        # kernel (plus a pad+slice round trip) would be pure overhead.
        return jnp.maximum(x, jnp.zeros((), x.dtype))

    rows = n // lane
    row_tile = _choose_row_tile(rows, lane, itemsize, sub)
    grid = (pl.cdiv(rows, row_tile),)

    x2 = x.reshape(rows, lane)  # contiguous view under jit; no extra HBM pass

    kwargs = {}
    if donate:
        # Mirrors nn.ReLU(inplace=True): reuse the input HBM buffer for the
        # output. Only beneficial when the caller also donates x at jit level;
        # otherwise XLA inserts a defensive copy, so default is False.
        kwargs["input_output_aliases"] = {0: 0}

    out = pl.pallas_call(
        _relu_kernel,
        out_shape=jax.ShapeDtypeStruct((rows, lane), x.dtype),
        grid_spec=pltpu.PrefetchScalarGridSpec(
            num_scalar_prefetch=0,
            grid=grid,
            in_specs=[pl.BlockSpec((row_tile, lane), lambda i: (i, 0))],
            out_specs=pl.BlockSpec((row_tile, lane), lambda i: (i, 0)),
        ),
        compiler_params=pltpu.CompilerParams(
            dimension_semantics=("parallel",),
            vmem_limit_bytes=_VMEM_LIMIT_BYTES,
        ),
        cost_estimate=pl.CostEstimate(
            flops=n, transcendentals=0, bytes_accessed=2 * n * itemsize
        ),
        **kwargs,
    )(x2)

    return out.reshape(orig_shape)


def relu_module_forward(inputs):
    """Mirror of Relu.forward: takes (x, m), returns (relu(x), m)."""
    x, m = inputs
    return (relu_pallas(x), m)


if __name__ == "__main__":
    key = jax.random.PRNGKey(0)
    kx, km = jax.random.split(key)

    # NCHW shapes consistent with the 2D sparse-invariant encoder:
    # batch=2, channels=4, spatial 16x16; mask m has 1 channel.
    x = jax.random.normal(kx, (2, 4, 16, 16), dtype=jnp.float32)
    m = (jax.random.uniform(km, (2, 1, 16, 16)) > 0.5).astype(jnp.float32)

    y, m_out = relu_module_forward((x, m))
    jax.block_until_ready(y)
    jax.block_until_ready(m_out)

    ref = jnp.maximum(x, 0.0)
    assert y.shape == x.shape and y.dtype == x.dtype
    assert jnp.allclose(y, ref)
    assert m_out is m  # mask passed through unchanged

    # Larger case: exercises wide-lane blocks and a multi-step parallel grid.
    x_big = jax.random.normal(kx, (4, 16, 32, 48), dtype=jnp.float32)
    y_big = relu_pallas(x_big)
    jax.block_until_ready(y_big)
    assert jnp.allclose(y_big, jnp.maximum(x_big, 0.0))

    # bf16 case: exercises the dtype-aware (16-row) sublane tiling.
    x_bf16 = x.astype(jnp.bfloat16)
    y_bf16 = relu_pallas(x_bf16)
    jax.block_until_ready(y_bf16)
    assert y_bf16.dtype == jnp.bfloat16
    assert jnp.allclose(y_bf16.astype(jnp.float32),
                        jnp.maximum(x_bf16, 0).astype(jnp.float32))

    # Ragged element count (not a multiple of 128): falls back to fused XLA op.
    x_odd = jax.random.normal(kx, (3, 5, 7), dtype=jnp.float32)
    y_odd = relu_pallas(x_odd)
    jax.block_until_ready(y_odd)
    assert jnp.allclose(y_odd, jnp.maximum(x_odd, 0.0))

    print("KERNEL_OK")
</pallas_src>

<mosaic_0001>
module attributes {stable_mosaic.version = 11 : i64} {
  func.func @_relu_kernel(%arg0: i32, %arg1: memref<8x128xf32, #tpu.memory_space<vmem>>, %arg2: memref<8x128xf32, #tpu.memory_space<vmem>>) attributes {dimension_semantics = [#tpu.dimension_semantics<parallel>], iteration_bounds = array<i64: 2>, scalar_prefetch = 0 : i64, scratch_operands = 0 : i64, tpu.core_type = #tpu.core_type<tc>, window_params = [{transform_indices = @transform_0, window_bounds = array<i64: 8, 128>}, {transform_indices = @transform_1, window_bounds = array<i64: 8, 128>}]} {
    %c0 = arith.constant 0 : index
    %c0_0 = arith.constant 0 : index
    %0 = vector.load %arg1[%c0, %c0_0] : memref<8x128xf32, #tpu.memory_space<vmem>>, vector<8x128xf32>
    %cst = arith.constant 0.000000e+00 : f32
    %1 = vector.broadcast %cst : f32 to vector<8x128xf32>
    %2 = arith.maximumf %0, %1 : vector<8x128xf32>
    %c0_1 = arith.constant 0 : index
    %c0_2 = arith.constant 0 : index
    %3 = vector.load %arg2[%c0_1, %c0_2] : memref<8x128xf32, #tpu.memory_space<vmem>>, vector<8x128xf32>
    tpu.vector_store %arg2[%c0_1, %c0_2], %2 {strides = array<i32>} : memref<8x128xf32, #tpu.memory_space<vmem>>, vector<8x128xf32>,
    return
  }
  func.func @transform_0(%arg0: i32) -> (i32, i32) {
    %c0_i32 = arith.constant 0 : i32
    %c0_i32_0 = arith.constant 0 : i32
    return %arg0, %c0_i32 : i32, i32
  }
  func.func @transform_1(%arg0: i32) -> (i32, i32) {
    %c0_i32 = arith.constant 0 : i32
    %c0_i32_0 = arith.constant 0 : i32
    return %arg0, %c0_i32 : i32, i32
  }
}

</mosaic_0001>

<llo_original>
// kernel: relu_pallas.1
$region0: #{relu_pallas.1}
  #allocation0 [shape = 'u32[]', space=smem, size = 0x4, offset = 0x4, fixed_abs, tag = 'smem constant byte address 0x4 - core index']
  #allocation1 [shape = 'u32[144,128]{1,0:T(1,128)}', space=vmem, size = 0x12000, scoped, tag = 'internal scratch']
  %s0 = inlined_call_operand.vmem [shape: f32[16,128], index: 0, kind: input, shape index: {}]
  %s1 = inlined_call_operand.vmem [shape: f32[16,128], index: 1, kind: output, shape index: {}]
  %s2 = sld [smem:[#allocation0]]
  $region37: #{relu_pallas.1} parent=0
    _
  %s4 = ssub.s32 1, %s2
  %s5 = scalar_select 0, %s4, %s2
  loop: start=0, step=1, limit=4
  $region2: #{relu_pallas.1} parent=0 // loop_pre_header
    _
  $region3: #{relu_pallas.1} parent=0 // loop_header
    %s7 = sphi 0, %s11
    %p8 = scmp.ge.s32.totalorder %s7, 4
    %s17 = sphi 0, %s19
    %s20 = sphi 0, %s17
    %s21 = sphi 0, %s20
    %s37 = sphi 0, %s21
    %s43 = sphi 0, %s45
    %s46 = sphi 0, %s43
    %s47 = sphi 0, %s46
    %s63 = sphi 0, %s47
  $region4: #{relu_pallas.1} parent=0 // loop_header_branch
    %10 = sbr.rel (%p8) target = $region8
  $region5: #{relu_pallas.1} parent=0 // loop_body
    %s12 = ssub.s32 %s7, 1
    %s13 = ssub.s32 %s7, 2
    %s14 = sadd.s32 %s7, 1
    %s15 = ssub.s32 %s7, %s14
    %p16 = scmp.eq.s32.totalorder %s15, 0
    %s18 = sadd.s32 %s17, 1
    %s19 = scalar_select %p16, %s17, %s18
    %p22 = pneg %p16
    %p23 = scmp.eq.s32.totalorder %s7, 1
    %p24 = por %p22, %p23
    %p25 = scmp.ne.s32.totalorder %s17, %s20
    %p26 = scmp.eq.s32.totalorder %s7, 0
    %p27 = por %p25, %p26
    %p28 = scmp.ne.s32.totalorder %s17, %s20
    %p29 = scmp.eq.s32.totalorder %s12, 1
    %p30 = por %p28, %p29
    %p31 = scmp.ne.s32.totalorder %s20, %s21
    %p32 = scmp.eq.s32.totalorder %s12, 0
    %p33 = por %p31, %p32
    %p34 = scmp.ne.s32.totalorder %s20, %s21
    %p35 = scmp.eq.s32.totalorder %s13, 1
    %p36 = por %p34, %p35
    %p38 = scmp.ne.s32.totalorder %s21, %s37
    %p39 = scmp.eq.s32.totalorder %s13, 0
    %p40 = por %p38, %p39
    %s41 = ssub.s32 %s7, %s14
    %p42 = scmp.eq.s32.totalorder %s41, 0
    %s44 = sadd.s32 %s43, 1
    %s45 = scalar_select %p42, %s43, %s44
    %p48 = pneg %p42
    %p49 = scmp.eq.s32.totalorder %s7, 1
    %p50 = por %p48, %p49
    %p51 = scmp.ne.s32.totalorder %s43, %s46
    %p52 = scmp.eq.s32.totalorder %s7, 0
    %p53 = por %p51, %p52
    %p54 = scmp.ne.s32.totalorder %s43, %s46
    %p55 = scmp.eq.s32.totalorder %s12, 1
    %p56 = por %p54, %p55
    %p57 = scmp.ne.s32.totalorder %s46, %s47
    %p58 = scmp.eq.s32.totalorder %s12, 0
    %p59 = por %p57, %p58
    %p60 = scmp.ne.s32.totalorder %s46, %s47
    %p61 = scmp.eq.s32.totalorder %s13, 1
    %p62 = por %p60, %p61
    %p64 = scmp.ne.s32.totalorder %s47, %s63
    %p65 = scmp.eq.s32.totalorder %s13, 0
    %p66 = por %p64, %p65
    %p67 = scmp.le.s32.totalorder 1, %s7
    %p68 = scmp.lt.s32.totalorder %s7, 3
    %p69 = pnand %p67, %p68
    %p70 = pneg %p69
    // Predicated region
    $region9: #{relu_pallas.1} parent=5 // pred_check
      _
    $region10: #{relu_pallas.1} parent=5 // pred_check_branch
      %72 = sbr.rel (%p69) target = $region12
    $region11: #{relu_pallas.1} parent=5 // pred_region
      %s73 = ssub.s32 %s7, 1
    $region12: #{relu_pallas.1} parent=5 // pred_fallthru
      _
    %p74 = scmp.lt.s32.totalorder %s7, 2
    // Predicated region
    $region13: #{relu_pallas.1} parent=5 // pred_check
      %p75 = pneg %p74
    $region14: #{relu_pallas.1} parent=5 // pred_check_branch
      %77 = sbr.rel (%p75) target = $region16
    $region15: #{relu_pallas.1} parent=5 // pred_region
      // Predicated region
      $region17: #{relu_pallas.1} parent=15 // pred_check
        %p78 = pneg %p27
      $region18: #{relu_pallas.1} parent=15 // pred_check_branch
        %80 = sbr.rel (%p78) target = $region20
      $region19: #{relu_pallas.1} parent=15 // pred_region
        %p81 = scmp.lt.s32.totalorder %s7, 1
        %s82 = scalar_select %p81, %s7, 1
        %s83 = smul.addr %s82, 8
        %s84 = scalar_lea.vmem %s0, %s83
      $region20: #{relu_pallas.1} parent=15 // pred_fallthru
        _
    $region16: #{relu_pallas.1} parent=5 // pred_fallthru
      _
    %p85 = scmp.le.s32.totalorder 1, %s7
    %p86 = scmp.lt.s32.totalorder %s7, 3
    %p87 = pnand %p85, %p86
    %p88 = pneg %p87
    // Predicated region
    $region21: #{relu_pallas.1} parent=5 // pred_check
      _
    $region22: #{relu_pallas.1} parent=5 // pred_check_branch
      %90 = sbr.rel (%p87) target = $region24
    $region23: #{relu_pallas.1} parent=5 // pred_region
      %s91 = ssub.s32 %s7, 1
      %p92 = scmp.lt.s32.totalorder %s12, 1
      %s93 = scalar_select %p92, %s12, 1
      %s94 = smul.addr %s93, 8
      %s95 = scalar_lea.vmem %s0, %s94
      %p96 = pneg %p33
      %p97 = pneg %p30
      %p98 = pneg %p59
      %p99 = pneg %p56
      %p100 = scmp.lt.s32.totalorder %s12, 1
      %s101 = scalar_select %p100, %s12, 1
      %s102 = smul.addr %s101, 8
      %s103 = scalar_lea.vmem %s1, %s102
      %p104 = scmp.lt.s32.totalorder %s12, 1
      %s105 = scalar_select %p104, %s12, 1
      %s106 = smul.addr %s105, 8
      %s107 = scalar_lea.vmem %s0, %s106
      %p108 = scmp.lt.s32.totalorder %s12, 1
      %s109 = scalar_select %p108, %s12, 1
      %s110 = smul.addr %s109, 8
      %s111 = scalar_lea.vmem %s1, %s110
      %v112 = vld [vmem:[%s107] sm:$0xff]
      %v113 = vmax.f32 %v112, 0.0
      %114 = vst [vmem:[%s111] sm:$0xff] %v113
      %p115 = scmp.lt.s32.totalorder %s12, 1
      %s116 = scalar_select %p115, %s12, 1
      %s117 = smul.addr %s116, 8
      %s118 = scalar_lea.vmem %s1, %s117
      // Predicated region
      $region25: #{relu_pallas.1} parent=23 // pred_check
        %p119 = pneg %p56
      $region26: #{relu_pallas.1} parent=23 // pred_check_branch
        %121 = sbr.rel (%p119) target = $region28
      $region27: #{relu_pallas.1} parent=23 // pred_region
        _
      $region28: #{relu_pallas.1} parent=23 // pred_fallthru
        _
    $region24: #{relu_pallas.1} parent=5 // pred_fallthru
      _
    %p122 = scmp.le.s32.totalorder 2, %s7
    // Predicated region
    $region29: #{relu_pallas.1} parent=5 // pred_check
      %p123 = pneg %p122
    $region30: #{relu_pallas.1} parent=5 // pred_check_branch
      %125 = sbr.rel (%p123) target = $region32
    $region31: #{relu_pallas.1} parent=5 // pred_region
      %s126 = ssub.s32 %s7, 2
      // Predicated region
      $region33: #{relu_pallas.1} parent=31 // pred_check
        %p127 = pneg %p62
      $region34: #{relu_pallas.1} parent=31 // pred_check_branch
        %129 = sbr.rel (%p127) target = $region36
      $region35: #{relu_pallas.1} parent=31 // pred_region
        %p130 = scmp.lt.s32.totalorder %s13, 1
        %s131 = scalar_select %p130, %s13, 1
        %s132 = smul.addr %s131, 8
        %s133 = scalar_lea.vmem %s1, %s132
      $region36: #{relu_pallas.1} parent=31 // pred_fallthru
        _
    $region32: #{relu_pallas.1} parent=5 // pred_fallthru
      _
  $region6: #{relu_pallas.1} parent=0 // loop_footer
    %s11 = sadd.s32 1, %s7
  $region7: #{relu_pallas.1} parent=0 // loop_footer_branch
    %6 = sbr.rel target = $region3
  $region8: #{relu_pallas.1} parent=0 // loop_exit
    _

</llo_original>
